<compile_context>
chip_gen: v6e
topology: v6e:2x2x1
jax: 0.10.0
libtpu: 0.0.40
codegen_flags: <defaults>
</compile_context>

<pallas_src>
import jax
import jax.numpy as jnp
from jax.experimental import pallas as pl
from jax.experimental.pallas import tpu as pltpu


def _decoder_kernel(f_ref, v_ref, c_ref, o_ref):
    # f_ref: [Q, TN]   mesoscale distribution tile (samples on lanes)
    # v_ref: [1, TN]   macroscale velocities tile
    # c_ref: [Q, 2]    fused constants: col 0 = weights, col 1 = weights*xi
    # o_ref: [1, TN]   output velocity tile (lane-dense)
    f = f_ref[...]                     # [Q, TN]
    v = v_ref[...]                     # [1, TN]
    c = c_ref[...]                     # [Q, 2]
    w = c[:, 0:1]                      # [Q, 1]
    wxi = c[:, 1:2]                    # [Q, 1]

    fw = f * w                                         # [Q, TN]
    density = jnp.sum(fw, axis=0, keepdims=True)       # [1, TN]  rho = sum_q f*w
    m0 = jnp.sum(f * wxi, axis=0, keepdims=True)       # [1, TN]  sum_q f*w*xi
    momentum = m0 + v * density                        # sum_q f*w*(xi + v)
    inv = pl.reciprocal(density + 1e-8, approx=True)   # EUP reciprocal
    o_ref[...] = momentum * inv


def _choose_tile(N, tile_n):
    tile_n = min(tile_n, N)
    if tile_n == N:
        return N
    if N % tile_n != 0 or tile_n % 128 != 0:
        # TODO(synk): pad the remainder tile instead of falling back to a
        # single-step grid for awkward N.
        return N
    return tile_n


def meso_to_macro_decoder(f_distribution, macro_velocities, xi_velocities, weights,
                          *, tile_n=2048):
    """Pallas wrapper reproducing MesoToMacroDecoder.forward.

    Args:
      f_distribution:   [N, Q] float32
      macro_velocities: [N, 1] float32
      xi_velocities:    [Q]    float32 (buffer)
      weights:          [Q]    float32 (buffer, ones(Q)/Q)
    Returns:
      velocity: [N, 1] float32
    """
    N, Q = f_distribution.shape
    tile_n = _choose_tile(N, tile_n)
    grid = (N // tile_n,)

    # Layout plumbing on the wrapper side: samples -> lanes.
    f_t = f_distribution.astype(jnp.float32).T                    # [Q, N]
    v_t = macro_velocities.astype(jnp.float32).reshape(1, N)      # [1, N]
    w = weights.astype(jnp.float32).reshape(Q)
    xi = xi_velocities.astype(jnp.float32).reshape(Q)
    consts = jnp.stack([w, w * xi], axis=1)                        # [Q, 2]

    cost = pl.CostEstimate(
        flops=5 * N * Q + 3 * N,
        transcendentals=N,
        bytes_accessed=4 * (N * Q + N + 2 * Q + N),
    )

    out = pl.pallas_call(
        _decoder_kernel,
        out_shape=jax.ShapeDtypeStruct((1, N), jnp.float32),
        grid_spec=pltpu.PrefetchScalarGridSpec(
            num_scalar_prefetch=0,
            grid=grid,
            in_specs=[
                pl.BlockSpec((Q, tile_n), lambda i: (0, i)),   # f (transposed)
                pl.BlockSpec((1, tile_n), lambda i: (0, i)),   # macro velocities
                pl.BlockSpec((Q, 2), lambda i: (0, 0)),        # fused constants
            ],
            out_specs=pl.BlockSpec((1, tile_n), lambda i: (0, i)),
        ),
        compiler_params=pltpu.CompilerParams(
            dimension_semantics=("parallel",)),
        cost_estimate=cost,
    )(f_t, v_t, consts)

    return out.reshape(N, 1)


def _reference(f_distribution, macro_velocities, xi_velocities, weights):
    # pure-JAX reference mirroring the PyTorch forward
    xi_shifted = xi_velocities[None, :] + macro_velocities          # [N, Q]
    density = jnp.sum(f_distribution * weights, axis=1, keepdims=True)
    momentum = jnp.sum(f_distribution * weights[None, :] * xi_shifted,
                       axis=1, keepdims=True)
    return momentum / (density + 1e-8)


if __name__ == "__main__":
    # Small shapes consistent with the module: N samples, Q mesoscale velocities.
    N, Q, d_features = 1024, 8, 2

    key = jax.random.PRNGKey(0)
    k1, k2 = jax.random.split(key)

    # Deterministic "buffers" from __init__:
    #   xi_velocities: [Q] lattice velocities (synthetic, e.g. linspace)
    #   weights:       ones(Q) / Q
    xi_velocities = jnp.linspace(-1.0, 1.0, Q, dtype=jnp.float32)
    weights = jnp.ones((Q,), dtype=jnp.float32) / Q

    # Inputs
    f_distribution = jax.random.uniform(k1, (N, Q), dtype=jnp.float32) + 0.1
    macro_velocities = jax.random.normal(k2, (N, 1), dtype=jnp.float32) * 0.1

    # tile_n=256 -> 4 grid steps at this small demo size; defaults to 2048 rows
    # per step for production-sized N.
    out = meso_to_macro_decoder(f_distribution, macro_velocities,
                                xi_velocities, weights, tile_n=256)
    out = jax.block_until_ready(out)

    ref = _reference(f_distribution, macro_velocities, xi_velocities, weights)
    assert out.shape == (N, 1)
    # approx reciprocal introduces a tiny relative error vs. the exact divide.
    assert jnp.allclose(out, ref, atol=1e-4, rtol=5e-3), "mismatch vs reference"

    print("KERNEL_OK")
</pallas_src>

<mosaic_0001>
module attributes {stable_mosaic.version = 11 : i64} {
  func.func @_decoder_kernel(%arg0: i32, %arg1: memref<8x256xf32, #tpu.memory_space<vmem>>, %arg2: memref<1x256xf32, #tpu.memory_space<vmem>>, %arg3: memref<8x2xf32, #tpu.memory_space<vmem>>, %arg4: memref<1x256xf32, #tpu.memory_space<vmem>>) attributes {dimension_semantics = [#tpu.dimension_semantics<parallel>], iteration_bounds = array<i64: 4>, scalar_prefetch = 0 : i64, scratch_operands = 0 : i64, tpu.core_type = #tpu.core_type<tc>, window_params = [{transform_indices = @transform_0, window_bounds = array<i64: 8, 256>}, {transform_indices = @transform_1, window_bounds = array<i64: 1, 256>}, {pipeline_mode = #tpu.pipeline_mode<synchronous>, transform_indices = @transform_2, window_bounds = array<i64: 8, 2>}, {transform_indices = @transform_3, window_bounds = array<i64: 1, 256>}]} {
    %c0 = arith.constant 0 : index
    %c0_0 = arith.constant 0 : index
    %0 = vector.load %arg1[%c0, %c0_0] : memref<8x256xf32, #tpu.memory_space<vmem>>, vector<8x256xf32>
    %c0_1 = arith.constant 0 : index
    %c0_2 = arith.constant 0 : index
    %1 = vector.load %arg2[%c0_1, %c0_2] : memref<1x256xf32, #tpu.memory_space<vmem>>, vector<1x256xf32>
    %c0_3 = arith.constant 0 : index
    %c0_4 = arith.constant 0 : index
    %2 = vector.load %arg3[%c0_3, %c0_4] : memref<8x2xf32, #tpu.memory_space<vmem>>, vector<8x2xf32>
    %3 = vector.extract_strided_slice %2 {offsets = [0, 0], sizes = [8, 1], strides = [1, 1]} : vector<8x2xf32> to vector<8x1xf32>
    %4 = vector.extract_strided_slice %2 {offsets = [0, 1], sizes = [8, 1], strides = [1, 1]} : vector<8x2xf32> to vector<8x1xf32>
    %5 = vector.broadcast %3 : vector<8x1xf32> to vector<8x256xf32>
    %6 = arith.mulf %0, %5 : vector<8x256xf32>
    %cst = arith.constant dense<0.000000e+00> : vector<256xf32>
    %7 = vector.multi_reduction <add>, %6, %cst [0] : vector<8x256xf32> to vector<256xf32>
    %8 = vector.shape_cast %7 : vector<256xf32> to vector<1x256xf32>
    %9 = vector.broadcast %4 : vector<8x1xf32> to vector<8x256xf32>
    %10 = arith.mulf %0, %9 : vector<8x256xf32>
    %cst_5 = arith.constant dense<0.000000e+00> : vector<256xf32>
    %11 = vector.multi_reduction <add>, %10, %cst_5 [0] : vector<8x256xf32> to vector<256xf32>
    %12 = vector.shape_cast %11 : vector<256xf32> to vector<1x256xf32>
    %13 = arith.mulf %1, %8 : vector<1x256xf32>
    %14 = arith.addf %12, %13 : vector<1x256xf32>
    %cst_6 = arith.constant 9.99999993E-9 : f32
    %15 = vector.broadcast %cst_6 : f32 to vector<1x256xf32>
    %16 = arith.addf %8, %15 : vector<1x256xf32>
    %17 = tpu.reciprocal %16 {approx = true} : vector<1x256xf32> -> vector<1x256xf32>
    %18 = arith.mulf %14, %17 : vector<1x256xf32>
    %c0_7 = arith.constant 0 : index
    %c0_8 = arith.constant 0 : index
    %19 = vector.load %arg4[%c0_7, %c0_8] : memref<1x256xf32, #tpu.memory_space<vmem>>, vector<1x256xf32>
    tpu.vector_store %arg4[%c0_7, %c0_8], %18 {strides = array<i32>} : memref<1x256xf32, #tpu.memory_space<vmem>>, vector<1x256xf32>,
    return
  }
  func.func @transform_0(%arg0: i32) -> (i32, i32) {
    %c0_i32 = arith.constant 0 : i32
    %c0_i32_0 = arith.constant 0 : i32
    return %c0_i32, %arg0 : i32, i32
  }
  func.func @transform_1(%arg0: i32) -> (i32, i32) {
    %c0_i32 = arith.constant 0 : i32
    %c0_i32_0 = arith.constant 0 : i32
    return %c0_i32, %arg0 : i32, i32
  }
  func.func @transform_2(%arg0: i32) -> (i32, i32) {
    %c0_i32 = arith.constant 0 : i32
    %c0_i32_0 = arith.constant 0 : i32
    %c0_i32_1 = arith.constant 0 : i32
    return %c0_i32, %c0_i32_0 : i32, i32
  }
  func.func @transform_3(%arg0: i32) -> (i32, i32) {
    %c0_i32 = arith.constant 0 : i32
    %c0_i32_0 = arith.constant 0 : i32
    return %c0_i32, %arg0 : i32, i32
  }
}

</mosaic_0001>

<llo_original>
// kernel: tpu_custom_call.1
$region0: #{tpu_custom_call.1}
  #allocation0 [shape = 'u32[]', space=smem, size = 0x4, offset = 0x4, fixed_abs, tag = 'smem constant byte address 0x4 - core index']
  #allocation1 [shape = 'u32[144,128]{1,0:T(1,128)}', space=vmem, size = 0x12000, scoped, tag = 'internal scratch']
  %s0 = inlined_call_operand.hbm [shape: f32[8,1024], index: 0, kind: input, shape index: {}]
  %s1 = inlined_call_operand.vmem [shape: f32[1,1024], index: 1, kind: input, shape index: {}]
  %s2 = inlined_call_operand.vmem [shape: f32[8,2], index: 2, kind: input, shape index: {}]
  %s3 = inlined_call_operand.hbm [shape: f32[1,1024], index: 3, kind: output, shape index: {}]
  %s4 = sld [smem:[#allocation0]]
  $region49: #{tpu_custom_call.1} parent=0
    _
  %s6 = ssub.s32 1, %s4
  %s7 = scalar_select 0, %s6, %s4
  $region1: #{tpu_custom_call.1} parent=0
    #allocation2 [shape = 'u8[16384]{0}', space=vmem, size = 0x4000, scoped, tag = 'input window, operand 0']
    #allocation3 [shape = 's32[2]{0}', space=sflag, size = 0x8, scoped, tag = 'scoped memory for tpu_custom_call.1']
    #allocation4 [shape = 's32[2]{0}', space=sflag, size = 0x8, scoped, tag = 'scoped memory for tpu_custom_call.1']
    #allocation5 [shape = 'u8[2048]{0}', space=vmem, size = 0x800, scoped, tag = 'output window, operand 0']
    %8 = vsyncpa [#allocation3], 0
    %s9 = scalar_lea.sflag [#allocation3], 1
    %10 = vsyncpa %s9, 0
    %11 = vsyncpa [#allocation4], 0
    %s12 = scalar_lea.sflag [#allocation4], 1
    %13 = vsyncpa %s12, 0
    loop: start=0, step=1, limit=6
    $region2: #{tpu_custom_call.1} parent=1 // loop_pre_header
      _
    $region3: #{tpu_custom_call.1} parent=1 // loop_header
      %s15 = sphi 0, %s19
      %p16 = scmp.ge.s32.totalorder %s15, 6
      %s25 = sphi 0, %s27
      %s28 = sphi 0, %s25
      %s29 = sphi 0, %s28
      %s45 = sphi 0, %s29
      %s51 = sphi 0, %s53
      %s54 = sphi 0, %s51
      %s55 = sphi 0, %s54
      %s71 = sphi 0, %s55
      %s75 = sphi 0, %s75
      %s77 = sphi 0, %s75
      %s78 = sphi 0, %s77
      %s92 = sphi 0, %s78
      %s98 = sphi 0, %s100
      %s101 = sphi 0, %s98
      %s102 = sphi 0, %s101
      %s118 = sphi 0, %s102
    $region4: #{tpu_custom_call.1} parent=1 // loop_header_branch
      %18 = sbr.rel (%p16) target = $region8
    $region5: #{tpu_custom_call.1} parent=1 // loop_body
      %s20 = ssub.s32 %s15, 1
      %s21 = ssub.s32 %s15, 2
      %s22 = sadd.s32 %s15, 1
      %s23 = ssub.s32 %s15, %s22
      %p24 = scmp.eq.s32.totalorder %s23, 0
      %s26 = sadd.s32 %s25, 1
      %s27 = scalar_select %p24, %s25, %s26
      %p30 = pneg %p24
      %p31 = scmp.eq.s32.totalorder %s15, 3
      %p32 = por %p30, %p31
      %p33 = scmp.ne.s32.totalorder %s25, %s28
      %p34 = scmp.eq.s32.totalorder %s15, 0
      %p35 = por %p33, %p34
      %p36 = scmp.ne.s32.totalorder %s25, %s28
      %p37 = scmp.eq.s32.totalorder %s20, 3
      %p38 = por %p36, %p37
      %p39 = scmp.ne.s32.totalorder %s28, %s29
      %p40 = scmp.eq.s32.totalorder %s20, 0
      %p41 = por %p39, %p40
      %p42 = scmp.ne.s32.totalorder %s28, %s29
      %p43 = scmp.eq.s32.totalorder %s21, 3
      %p44 = por %p42, %p43
      %p46 = scmp.ne.s32.totalorder %s29, %s45
      %p47 = scmp.eq.s32.totalorder %s21, 0
      %p48 = por %p46, %p47
      %s49 = ssub.s32 %s15, %s22
      %p50 = scmp.eq.s32.totalorder %s49, 0
      %s52 = sadd.s32 %s51, 1
      %s53 = scalar_select %p50, %s51, %s52
      %p56 = pneg %p50
      %p57 = scmp.eq.s32.totalorder %s15, 3
      %p58 = por %p56, %p57
      %p59 = scmp.ne.s32.totalorder %s51, %s54
      %p60 = scmp.eq.s32.totalorder %s15, 0
      %p61 = por %p59, %p60
      %p62 = scmp.ne.s32.totalorder %s51, %s54
      %p63 = scmp.eq.s32.totalorder %s20, 3
      %p64 = por %p62, %p63
      %p65 = scmp.ne.s32.totalorder %s54, %s55
      %p66 = scmp.eq.s32.totalorder %s20, 0
      %p67 = por %p65, %p66
      %p68 = scmp.ne.s32.totalorder %s54, %s55
      %p69 = scmp.eq.s32.totalorder %s21, 3
      %p70 = por %p68, %p69
      %p72 = scmp.ne.s32.totalorder %s55, %s71
      %p73 = scmp.eq.s32.totalorder %s21, 0
      %p74 = por %p72, %p73
      %s76 = sadd.s32 %s75, 1
      %p79 = scmp.eq.s32.totalorder %s15, 3
      %p80 = scmp.ne.s32.totalorder %s75, %s77
      %p81 = scmp.eq.s32.totalorder %s15, 0
      %p82 = por %p80, %p81
      %p83 = scmp.ne.s32.totalorder %s75, %s77
      %p84 = scmp.eq.s32.totalorder %s20, 3
      %p85 = por %p83, %p84
      %p86 = scmp.ne.s32.totalorder %s77, %s78
      %p87 = scmp.eq.s32.totalorder %s20, 0
      %p88 = por %p86, %p87
      %p89 = scmp.ne.s32.totalorder %s77, %s78
      %p90 = scmp.eq.s32.totalorder %s21, 3
      %p91 = por %p89, %p90
      %p93 = scmp.ne.s32.totalorder %s78, %s92
      %p94 = scmp.eq.s32.totalorder %s21, 0
      %p95 = por %p93, %p94
      %s96 = ssub.s32 %s15, %s22
      %p97 = scmp.eq.s32.totalorder %s96, 0
      %s99 = sadd.s32 %s98, 1
      %s100 = scalar_select %p97, %s98, %s99
      %p103 = pneg %p97
      %p104 = scmp.eq.s32.totalorder %s15, 3
      %p105 = por %p103, %p104
      %p106 = scmp.ne.s32.totalorder %s98, %s101
      %p107 = scmp.eq.s32.totalorder %s15, 0
      %p108 = por %p106, %p107
      %p109 = scmp.ne.s32.totalorder %s98, %s101
      %p110 = scmp.eq.s32.totalorder %s20, 3
      %p111 = por %p109, %p110
      %p112 = scmp.ne.s32.totalorder %s101, %s102
      %p113 = scmp.eq.s32.totalorder %s20, 0
      %p114 = por %p112, %p113
      %p115 = scmp.ne.s32.totalorder %s101, %s102
      %p116 = scmp.eq.s32.totalorder %s21, 3
      %p117 = por %p115, %p116
      %p119 = scmp.ne.s32.totalorder %s102, %s118
      %p120 = scmp.eq.s32.totalorder %s21, 0
      %p121 = por %p119, %p120
      %p122 = scmp.le.s32.totalorder 1, %s15
      %p123 = scmp.lt.s32.totalorder %s15, 5
      %p124 = pnand %p122, %p123
      %p125 = pneg %p124
      // Predicated region
      $region9: #{tpu_custom_call.1} parent=5 // pred_check
        _
      $region10: #{tpu_custom_call.1} parent=5 // pred_check_branch
        %127 = sbr.rel (%p124) target = $region12
      $region11: #{tpu_custom_call.1} parent=5 // pred_region
        %s128 = ssub.s32 %s15, 1
        // Predicated region
        $region13: #{tpu_custom_call.1} parent=11 // pred_check
          %p129 = pneg %p88
        $region14: #{tpu_custom_call.1} parent=11 // pred_check_branch
          %131 = sbr.rel (%p129) target = $region16
        $region15: #{tpu_custom_call.1} parent=11 // pred_region
          _
        $region16: #{tpu_custom_call.1} parent=11 // pred_fallthru
          _
      $region12: #{tpu_custom_call.1} parent=5 // pred_fallthru
        _
      %p132 = scmp.lt.s32.totalorder %s15, 4
      // Predicated region
      $region17: #{tpu_custom_call.1} parent=5 // pred_check
        %p133 = pneg %p132
      $region18: #{tpu_custom_call.1} parent=5 // pred_check_branch
        %135 = sbr.rel (%p133) target = $region20
      $region19: #{tpu_custom_call.1} parent=5 // pred_region
        // Predicated region
        $region21: #{tpu_custom_call.1} parent=19 // pred_check
          %p136 = pneg %p35
        $region22: #{tpu_custom_call.1} parent=19 // pred_check_branch
          %138 = sbr.rel (%p136) target = $region24
        $region23: #{tpu_custom_call.1} parent=19 // pred_region
          %s139 = sand.u32 %s25, 1
          %s140 = scalar_lea.sflag [#allocation3], %s139
          %s141 = sand.u32 %s25, 1
          %s142 = smul.addr %s141, 16
          %s143 = scalar_lea.vmem [#allocation2], %s142
          %s144 = smul.u32 2, %s15
          %s146 = ssub.s32 256, 256
          %147 = vsyncadd %s140, %s146
          %s148 = smul.addr %s144, 128
          %s149 = scalar_lea.hbm %s0, %s148
          %s151 = sshll.u32 %s143, 4
          %s152 = int_to_ptr.vmem [resolvable:$true] %s151
          %154 = dma.hbm_to_vmem [thread:$0]  %s149, 256, %s152, %s140
        $region24: #{tpu_custom_call.1} parent=19 // pred_fallthru
          _
        // Predicated region
        $region25: #{tpu_custom_call.1} parent=19 // pred_check
          %p155 = pneg %p61
        $region26: #{tpu_custom_call.1} parent=19 // pred_check_branch
          %157 = sbr.rel (%p155) target = $region28
        $region27: #{tpu_custom_call.1} parent=19 // pred_region
          %s158 = smul.u32 2, %s15
          %p159 = scmp.lt.s32.totalorder %s158, 7
          %s160 = scalar_select %p159, %s158, 7
          %s161 = scalar_lea.vmem %s1, %s160
          %s162 = smul.u32 2, %s15
        $region28: #{tpu_custom_call.1} parent=19 // pred_fallthru
          _
      $region20: #{tpu_custom_call.1} parent=5 // pred_fallthru
        _
      %p163 = scmp.le.s32.totalorder 1, %s15
      %p164 = scmp.lt.s32.totalorder %s15, 5
      %p165 = pnand %p163, %p164
      %p166 = pneg %p165
      // Predicated region
      $region29: #{tpu_custom_call.1} parent=5 // pred_check
        _
      $region30: #{tpu_custom_call.1} parent=5 // pred_check_branch
        %168 = sbr.rel (%p165) target = $region32
      $region31: #{tpu_custom_call.1} parent=5 // pred_region
        %s169 = ssub.s32 %s15, 1
        %s170 = sand.u32 %s28, 1
        %s171 = scalar_lea.sflag [#allocation3], %s170
        %s172 = sand.u32 %s28, 1
        %s173 = smul.addr %s172, 16
        %s174 = scalar_lea.vmem [#allocation2], %s173
        // Predicated region
        $region33: #{tpu_custom_call.1} parent=31 // pred_check
          %p175 = pneg %p41
        $region34: #{tpu_custom_call.1} parent=31 // pred_check_branch
          %177 = sbr.rel (%p175) target = $region36
        $region35: #{tpu_custom_call.1} parent=31 // pred_region
          %178 = dma.done %s171, 256
        $region36: #{tpu_custom_call.1} parent=31 // pred_fallthru
          _
        %s179 = sand.u32 %s28, 1
        %s180 = scalar_lea.sflag [#allocation3], %s179
        %s181 = sand.u32 %s28, 1
        %s182 = smul.addr %s181, 16
        %s183 = scalar_lea.vmem [#allocation2], %s182
        %p184 = pneg %p41
        %p185 = pneg %p38
        %s186 = smul.u32 2, %s20
        %p187 = scmp.lt.s32.totalorder %s186, 7
        %s188 = scalar_select %p187, %s186, 7
        %s189 = scalar_lea.vmem %s1, %s188
        %p190 = pneg %p67
        %p191 = pneg %p64
        %p192 = pneg %p88
        %p193 = pneg %p85
        %p194 = pneg %p114
        %p195 = pneg %p111
        %s196 = sand.u32 %s101, 1
        %s197 = scalar_lea.sflag [#allocation4], %s196
        %s198 = sand.u32 %s101, 1
        %s199 = smul.addr %s198, 2
        %s200 = scalar_lea.vmem [#allocation5], %s199
        %s201 = smul.u32 2, %s20
        %s202 = smul.u32 2, %s20
        %p203 = scmp.lt.s32.totalorder %s202, 7
        %s204 = scalar_select %p203, %s202, 7
        %s205 = scalar_lea.vmem %s1, %s204
        %s206 = smul.u32 2, %s20
        %s207 = smul.u32 2, %s20
        %v208 = vld [vmem:[%s174] sm:$0xff]
        %v209 = vld [vmem:[%s174 + $0x8] sm:$0xff]
        %v210 = vld [vmem:[%s205] sm:$0x3]
        %v211 = vld [vmem:[%s2] sm:$0xff]
        %213 = vset.pattern.permute.xlu0 0
        %214 = vperm.xlu0 %213, %v211
        %v215 = vpop.permute.xlu0 %214
        %v217 = vmul.f32 %v208, %v215
        %v218 = vmul.f32 %v209, %v215
        %v219 = vrot.slane %v217, 4
        %v220 = vadd.f32 %v217, %v219
        %v221 = vrot.slane %v220, 2
        %v222 = vadd.f32 %v220, %v221
        %v223 = vrot.slane %v222, 1
        %v224 = vadd.f32 %v222, %v223
        %v225 = vrot.slane %v218, 4
        %v226 = vadd.f32 %v218, %v225
        %v227 = vrot.slane %v226, 2
        %v228 = vadd.f32 %v226, %v227
        %v229 = vrot.slane %v228, 1
        %v230 = vadd.f32 %v228, %v229
        %231 = vset.pattern.permute.xlu0 1
        %232 = vperm.xlu0 %231, %v211
        %v233 = vpop.permute.xlu0 %232
        %v235 = vmul.f32 %v208, %v233
        %v236 = vmul.f32 %v209, %v233
        %v237 = vrot.slane %v235, 4
        %v238 = vadd.f32 %v235, %v237
        %v239 = vrot.slane %v238, 2
        %v240 = vadd.f32 %v238, %v239
        %v241 = vrot.slane %v240, 1
        %v242 = vadd.f32 %v240, %v241
        %v243 = vrot.slane %v236, 4
        %v244 = vadd.f32 %v236, %v243
        %v245 = vrot.slane %v244, 2
        %v246 = vadd.f32 %v244, %v245
        %v247 = vrot.slane %v246, 1
        %v248 = vadd.f32 %v246, %v247
        %v251 = vcombine.low %v224, %v230
        %v253 = vunpack.c.l.s4 1966171168
        %v254 = vunpack.c.0.s8 %v253
        %v255 = vlaneseq
        %v256 = vshrl.u32 %v255, 7
        %v257 = vsub.s32 %v254, %v256
        %v258 = vrot.slane %v251, %v257
        %v260 = vunpack.c.l.s4 1966171168
        %v261 = vunpack.c.0.s8 %v260
        %v262 = vlaneseq
        %v263 = vshrl.u32 %v262, 7
        %v264 = vsub.s32 %v261, %v263
        %v265 = vrot.slane %v258, %v264
        %v267 = vmul.f32 %v210, %v265
        %v269 = vlaneseq
        %v270 = vshrl.u32 %v269, 7
        %v271 = vsub.s32 0, %v270
        %v272 = vrot.slane %v267, %v271
        %v273 = vlaneseq
        %v274 = vshrl.u32 %v273, 7
        %v275 = vsub.s32 1, %v274
        %v276 = vrot.slane %v267, %v275
        %v279 = vadd.f32 %v242, %v272
        %v280 = vadd.f32 %v248, %v276
        %v281 = vadd.f32 %v224, 1e-08
        %v282 = vadd.f32 %v230, 1e-08
        %v283 = vrcp.pop %v281
        %v284 = vrcp.pop %v282
        %v285 = vmul.f32 %v279, %v283
        %v286 = vmul.f32 %v280, %v284
        %v289 = vcombine.low %v285, %v286
        %v291 = vunpack.c.l.s4 1966171168
        %v292 = vunpack.c.0.s8 %v291
        %v293 = vlaneseq
        %v294 = vshrl.u32 %v293, 7
        %v295 = vsub.s32 %v292, %v294
        %v296 = vrot.slane %v289, %v295
        %v298 = vunpack.c.l.s4 1966171168
        %v299 = vunpack.c.0.s8 %v298
        %v300 = vlaneseq
        %v301 = vshrl.u32 %v300, 7
        %v302 = vsub.s32 %v299, %v301
        %v303 = vrot.slane %v296, %v302
        %v305 = vlaneseq
        %vm306 = vcmp.ge.s32.totalorder %v305, 0
        %vm307 = vcmp.lt.s32.totalorder %v305, 256
        %vm308 = vmand %vm306, %vm307
        %309 = vst.msk [vmem:[%s200] sm:$0x3] %vm308, %v303
        %s310 = sand.u32 %s101, 1
        %s311 = scalar_lea.sflag [#allocation4], %s310
        %s312 = sand.u32 %s101, 1
        %s313 = smul.addr %s312, 2
        %s314 = scalar_lea.vmem [#allocation5], %s313
        // Predicated region
        $region37: #{tpu_custom_call.1} parent=31 // pred_check
          %p315 = pneg %p111
        $region38: #{tpu_custom_call.1} parent=31 // pred_check_branch
          %317 = sbr.rel (%p315) target = $region40
        $region39: #{tpu_custom_call.1} parent=31 // pred_region
          %s318 = smul.u32 2, %s20
          %s320 = ssub.s32 32, 32
          %321 = vsyncadd %s311, %s320
          %s322 = smul.addr %s318, 16
          %s323 = scalar_lea.hbm %s3, %s322
          %s325 = sshll.u32 %s314, 4
          %s326 = int_to_ptr.vmem [resolvable:$true] %s325
          %328 = dma.vmem_to_hbm [thread:$0]  %s326, 32, %s323, %s311
        $region40: #{tpu_custom_call.1} parent=31 // pred_fallthru
          _
      $region32: #{tpu_custom_call.1} parent=5 // pred_fallthru
        _
      %p329 = scmp.le.s32.totalorder 2, %s15
      // Predicated region
      $region41: #{tpu_custom_call.1} parent=5 // pred_check
        %p330 = pneg %p329
      $region42: #{tpu_custom_call.1} parent=5 // pred_check_branch
        %332 = sbr.rel (%p330) target = $region44
      $region43: #{tpu_custom_call.1} parent=5 // pred_region
        %s333 = ssub.s32 %s15, 2
        // Predicated region
        $region45: #{tpu_custom_call.1} parent=43 // pred_check
          %p334 = pneg %p117
        $region46: #{tpu_custom_call.1} parent=43 // pred_check_branch
          %336 = sbr.rel (%p334) target = $region48
        $region47: #{tpu_custom_call.1} parent=43 // pred_region
          %s337 = sand.u32 %s102, 1
          %s338 = scalar_lea.sflag [#allocation4], %s337
          %s339 = sand.u32 %s102, 1
          %s340 = smul.addr %s339, 2
          %s341 = scalar_lea.vmem [#allocation5], %s340
          %342 = dma.done %s338, 32
        $region48: #{tpu_custom_call.1} parent=43 // pred_fallthru
          _
      $region44: #{tpu_custom_call.1} parent=5 // pred_fallthru
        _
    $region6: #{tpu_custom_call.1} parent=1 // loop_footer
      %s19 = sadd.s32 1, %s15
    $region7: #{tpu_custom_call.1} parent=1 // loop_footer_branch
      %14 = sbr.rel target = $region3
    $region8: #{tpu_custom_call.1} parent=1 // loop_exit
      _
    %343 = vsyncpa [#allocation3], 1
    %s344 = scalar_lea.sflag [#allocation3], 1
    %345 = vsyncpa %s344, 1
    %346 = vsyncpa [#allocation4], 1
    %s347 = scalar_lea.sflag [#allocation4], 1
    %348 = vsyncpa %s347, 1

</llo_original>
